<compile_context>
chip_gen: v7x
topology: tpu7x:2x2x1
jax: 0.10.0
libtpu: 0.0.40
codegen_flags: <defaults>
</compile_context>

<pallas_src>
import math

import jax
import jax.numpy as jnp
from jax import lax
from jax.experimental import pallas as pl
from jax.experimental.pallas import tpu as pltpu

_LANE = 128
_VMEM_LIMIT_BYTES = 32 * 1024 * 1024  # explicit scoped-VMEM budget (safe on all gens)


def _round_up(a: int, b: int) -> int:
    return ((a + b - 1) // b) * b


def _sublane_pack(itemsize: int) -> int:
    # Min sublane multiple per dtype: f32 -> 8, bf16/f16 -> 16, int8/fp8 -> 32.
    return max(8, 32 // max(1, itemsize))


def _target_block_bytes() -> int:
    """Per-buffer tile size; larger tiles amortize per-grid-step overhead."""
    try:
        kind = jax.devices()[0].device_kind.lower()
    except Exception:
        kind = ""
    if any(tag in kind for tag in ("v6", "v7", "7x")):
        return 4 << 20   # 4 MiB/buffer: ~16 MiB double-buffered in+out on v6e/v7x
    return 2 << 20       # 2 MiB/buffer: ~8 MiB total, safe on v5e and older


def _make_activation_kernel(activate_fun: str):
    """Returns a Pallas kernel body implementing the chosen activation."""
    if activate_fun == "relu":
        def kernel(x_ref, o_ref):
            x = x_ref[...]
            o_ref[...] = jnp.maximum(x, 0).astype(o_ref.dtype)
        return kernel
    elif activate_fun == "gelu":
        inv_sqrt2 = 1.0 / math.sqrt(2.0)

        def kernel(x_ref, o_ref):
            # Exact erf-based gelu (matches the torch.erf formulation). Compute
            # in f32 for accuracy; the kernel stays DMA-bound so the upcast is
            # hidden under memory traffic on v5e/v6e f32 inputs.
            xf = x_ref[...].astype(jnp.float32)
            g = xf * 0.5 * (1.0 + lax.erf(xf * inv_sqrt2))
            o_ref[...] = g.astype(o_ref.dtype)
        return kernel
    else:
        raise ValueError(f"unsupported activate_fun: {activate_fun}")


def activate_fun(x, opt: str):
    """Pallas equivalent of ActivateFun(opt)(x). Works on any input shape."""
    if opt not in ("relu", "gelu"):
        raise ValueError(f"unsupported activate_fun: {opt}")

    orig_shape = x.shape
    n = int(x.size)
    if n == 0:
        # Zero-extent grids/blocks do not lower cleanly; activation of an
        # empty tensor is the empty tensor.
        return x

    itemsize = jnp.dtype(x.dtype).itemsize
    pack = _sublane_pack(itemsize)

    # ---- layout plumbing: pick a lane-dense width, prefer the zero-copy path ----
    lanes = None
    for cand in (512, 256, 128):
        if n % cand == 0:
            lanes = cand
            break

    flat = x.reshape(-1)
    if lanes is None:
        # Ragged fallback: pad by at most 127 elements (relu/gelu(0) = 0) and
        # slice the tail back off after the call.
        lanes = _LANE
        padded_n = _round_up(n, lanes)
        flat = jnp.pad(flat, (0, padded_n - n))
        padded = True
    else:
        padded_n = n
        padded = False

    rows = padded_n // lanes

    # Block rows: ~2-4 MiB per buffer, rounded to the dtype sublane multiple.
    block_rows = (_target_block_bytes() // (lanes * itemsize)) // pack * pack
    block_rows = max(pack, block_rows)
    if block_rows >= rows:
        block_rows = rows          # single block spanning the full array (always legal)
        grid = 1
    else:
        grid = pl.cdiv(rows, block_rows)  # partial tail block is masked by Pallas

    x2d = flat.reshape(rows, lanes)
    kernel = _make_activation_kernel(opt)

    out2d = pl.pallas_call(
        kernel,
        out_shape=jax.ShapeDtypeStruct((rows, lanes), x.dtype),
        grid_spec=pltpu.PrefetchScalarGridSpec(
            num_scalar_prefetch=0,
            grid=(grid,),
            in_specs=[pl.BlockSpec((block_rows, lanes), lambda i: (i, 0))],
            out_specs=pl.BlockSpec((block_rows, lanes), lambda i: (i, 0)),
        ),
        compiler_params=pltpu.CompilerParams(
            # Rows are independent -> shard across TensorCores on v7x.
            dimension_semantics=("parallel",),
            vmem_limit_bytes=_VMEM_LIMIT_BYTES,
        ),
    )(x2d)

    if padded:
        return out2d.reshape(-1)[:n].reshape(orig_shape)
    return out2d.reshape(orig_shape)


def _gelu_ref(x):
    xf = x.astype(jnp.float32)
    return (xf * 0.5 * (1.0 + lax.erf(xf / math.sqrt(2.0)))).astype(x.dtype)


if __name__ == "__main__":
    key = jax.random.PRNGKey(0)
    k1, k2, k3 = jax.random.split(key, 3)

    # Typical (batch, seq, hidden) activation input -> exercises the zero-copy path.
    x = jax.random.normal(k1, (2, 8, 32), dtype=jnp.float32)
    # A ragged shape to exercise the minimal-padding fallback path.
    x_ragged = jax.random.normal(k2, (3, 5, 7), dtype=jnp.float32)
    # bf16 input to exercise the dtype-aware sublane packing.
    x_bf16 = jax.random.normal(k3, (2, 8, 64), dtype=jnp.float32).astype(jnp.bfloat16)

    # gelu path
    y_gelu = activate_fun(x, "gelu")
    jax.block_until_ready(y_gelu)
    assert jnp.allclose(y_gelu, _gelu_ref(x), atol=1e-5, rtol=1e-5)

    y_gelu_r = activate_fun(x_ragged, "gelu")
    jax.block_until_ready(y_gelu_r)
    assert jnp.allclose(y_gelu_r, _gelu_ref(x_ragged), atol=1e-5, rtol=1e-5)

    y_gelu_b = activate_fun(x_bf16, "gelu")
    jax.block_until_ready(y_gelu_b)
    assert jnp.allclose(y_gelu_b.astype(jnp.float32),
                        _gelu_ref(x_bf16).astype(jnp.float32),
                        atol=2e-2, rtol=2e-2)

    # relu path
    y_relu = activate_fun(x, "relu")
    jax.block_until_ready(y_relu)
    assert jnp.array_equal(y_relu, jnp.maximum(x, 0.0))

    y_relu_r = activate_fun(x_ragged, "relu")
    jax.block_until_ready(y_relu_r)
    assert jnp.array_equal(y_relu_r, jnp.maximum(x_ragged, 0.0))

    y_relu_b = activate_fun(x_bf16, "relu")
    jax.block_until_ready(y_relu_b)
    assert jnp.array_equal(y_relu_b, jnp.maximum(x_bf16, jnp.bfloat16(0)))

    print("KERNEL_OK")
</pallas_src>

<mosaic_0001>
module attributes {stable_mosaic.version = 11 : i64} {
  func.func @kernel(%arg0: i32, %arg1: memref<1x512xf32, #tpu.memory_space<vmem>>, %arg2: memref<1x512xf32, #tpu.memory_space<vmem>>) attributes {dimension_semantics = [#tpu.dimension_semantics<parallel>], iteration_bounds = array<i64: 1>, scalar_prefetch = 0 : i64, scratch_operands = 0 : i64, tpu.core_type = #tpu.core_type<tc>, window_params = [{transform_indices = @transform_0, window_bounds = array<i64: 1, 512>}, {transform_indices = @transform_1, window_bounds = array<i64: 1, 512>}]} {
    %c0 = arith.constant 0 : index
    %c0_0 = arith.constant 0 : index
    %0 = vector.load %arg1[%c0, %c0_0] : memref<1x512xf32, #tpu.memory_space<vmem>>, vector<1x512xf32>
    %cst = arith.constant 5.000000e-01 : f32
    %1 = vector.broadcast %cst : f32 to vector<1x512xf32>
    %2 = arith.mulf %0, %1 : vector<1x512xf32>
    %cst_1 = arith.constant 0.707106769 : f32
    %3 = vector.broadcast %cst_1 : f32 to vector<1x512xf32>
    %4 = arith.mulf %0, %3 : vector<1x512xf32>
    %5 = math.erf %4 : vector<1x512xf32>
    %cst_2 = arith.constant 1.000000e+00 : f32
    %6 = vector.broadcast %cst_2 : f32 to vector<1x512xf32>
    %7 = arith.addf %6, %5 : vector<1x512xf32>
    %8 = arith.mulf %2, %7 : vector<1x512xf32>
    %c0_3 = arith.constant 0 : index
    %c0_4 = arith.constant 0 : index
    %9 = vector.load %arg2[%c0_3, %c0_4] : memref<1x512xf32, #tpu.memory_space<vmem>>, vector<1x512xf32>
    tpu.vector_store %arg2[%c0_3, %c0_4], %8 {strides = array<i32>} : memref<1x512xf32, #tpu.memory_space<vmem>>, vector<1x512xf32>,
    return
  }
  func.func @transform_0(%arg0: i32) -> (i32, i32) {
    %c0_i32 = arith.constant 0 : i32
    %c0_i32_0 = arith.constant 0 : i32
    return %arg0, %c0_i32 : i32, i32
  }
  func.func @transform_1(%arg0: i32) -> (i32, i32) {
    %c0_i32 = arith.constant 0 : i32
    %c0_i32_0 = arith.constant 0 : i32
    return %arg0, %c0_i32 : i32, i32
  }
}

</mosaic_0001>

<llo_original>
// kernel: tpu_custom_call.1
$region0: #{tpu_custom_call.1}
  #allocation0 [shape = 'u32[]', space=smem, size = 0x4, offset = 0x4, fixed_abs, tag = 'smem constant byte address 0x4 - core index']
  #allocation1 [shape = 'u32[144,128]{1,0:T(1,128)}', space=vmem, size = 0x12000, scoped, tag = 'internal scratch']
  %s0 = inlined_call_operand.hbm [shape: f32[1,512], index: 0, kind: input, shape index: {}]
  %s1 = inlined_call_operand.hbm [shape: f32[1,512], index: 1, kind: output, shape index: {}]
  %s2 = sld [smem:[#allocation0]]
  $region18: #{tpu_custom_call.1} parent=0
    _
  %s4 = ssub.s32 1, %s2
  %s5 = scalar_select 0, %s4, %s2
  $region1: #{tpu_custom_call.1} parent=0
    #allocation2 [shape = 'u8[2048]{0}', space=vmem, size = 0x800, scoped, tag = 'input window, operand 0, single buffered']
    #allocation3 [shape = 's32[1]{0}', space=sflag, size = 0x4, scoped, tag = 'scoped memory for tpu_custom_call.1']
    #allocation4 [shape = 's32[1]{0}', space=sflag, size = 0x4, scoped, tag = 'scoped memory for tpu_custom_call.1']
    #allocation5 [shape = 'u8[2048]{0}', space=vmem, size = 0x800, scoped, tag = 'output window, operand 0, single buffered']
    %6 = vsyncpa [#allocation3], 0
    %7 = vsyncpa [#allocation4], 0
    // Predicated region
    $region2: #{tpu_custom_call.1} parent=1 // pred_check
      _
    $region3: #{tpu_custom_call.1} parent=1 // pred_check_branch
      %9 = sbr.rel (0) target = $region5
    $region4: #{tpu_custom_call.1} parent=1 // pred_region
      %s11 = ssub.s32 64, 64
      %12 = vsyncadd [#allocation3], %s11
      %s14 = sshll.u32 [#allocation2], 4
      %s15 = int_to_ptr.vmem [resolvable:$true] %s14
      %17 = dma.hbm_to_vmem [thread:$0]  %s0, 64, %s15, [#allocation3]
    $region5: #{tpu_custom_call.1} parent=1 // pred_fallthru
      _
    // Predicated region
    $region6: #{tpu_custom_call.1} parent=1 // pred_check
      _
    $region7: #{tpu_custom_call.1} parent=1 // pred_check_branch
      %19 = sbr.rel (0) target = $region9
    $region8: #{tpu_custom_call.1} parent=1 // pred_region
      %20 = dma.done [#allocation3], 64
    $region9: #{tpu_custom_call.1} parent=1 // pred_fallthru
      _
    %v21 = vld [vmem:[#allocation2] sm:$0xf]
    %v22 = vmul.f32 %v21, 0.5
    %v23 = vmul.f32 %v21, 0.70710677
    %v24 = verf.f32.pop %v23
    %v25 = vadd.f32 %v24, 1.0
    %v26 = vmul.f32 %v22, %v25
    %v27 = vlaneseq
    %vm28 = vcmp.ge.s32.totalorder %v27, 0
    %vm29 = vcmp.lt.s32.totalorder %v27, 512
    %vm30 = vmand %vm28, %vm29
    %31 = vst.msk [vmem:[#allocation5] sm:$0xf] %vm30, %v26
    // Predicated region
    $region10: #{tpu_custom_call.1} parent=1 // pred_check
      _
    $region11: #{tpu_custom_call.1} parent=1 // pred_check_branch
      %33 = sbr.rel (0) target = $region13
    $region12: #{tpu_custom_call.1} parent=1 // pred_region
      %s35 = ssub.s32 64, 64
      %36 = vsyncadd [#allocation4], %s35
      %s38 = sshll.u32 [#allocation5], 4
      %s39 = int_to_ptr.vmem [resolvable:$true] %s38
      %41 = dma.vmem_to_hbm [thread:$0]  %s39, 64, %s1, [#allocation4]
    $region13: #{tpu_custom_call.1} parent=1 // pred_fallthru
      _
    // Predicated region
    $region14: #{tpu_custom_call.1} parent=1 // pred_check
      _
    $region15: #{tpu_custom_call.1} parent=1 // pred_check_branch
      %43 = sbr.rel (0) target = $region17
    $region16: #{tpu_custom_call.1} parent=1 // pred_region
      %44 = dma.done [#allocation4], 64
    $region17: #{tpu_custom_call.1} parent=1 // pred_fallthru
      _
    %45 = vsyncpa [#allocation3], 1
    %46 = vsyncpa [#allocation4], 1

</llo_original>
